<compile_context>
chip_gen: v7x
topology: tpu7x:2x2x1
jax: 0.10.0
libtpu: 0.0.40
codegen_flags: <defaults>
</compile_context>

<pallas_src>
import functools

import jax
import jax.numpy as jnp
from jax.experimental import pallas as pl
from jax.experimental.pallas import tpu as pltpu


def _round_up(x, m):
    return ((x + m - 1) // m) * m


def self_attention_kernel(w_ref, x_ref, o_ref, *, t_valid, t_padded):
    # w_ref: (1, Hp)       linear weight (zero-padded along H)
    # x_ref: (BB, Tp, Hp)  batch block of encodings (zero-padded)
    # o_ref: (BB, Hp)      pooled outputs for this batch block
    x = x_ref[...].astype(jnp.float32)            # (BB, Tp, Hp)
    w = w_ref[...].astype(jnp.float32)            # (1, Hp)

    # scores[b, t] = <x[b, t, :], w>  -> dense (BB, Tp); T lives on the lane axis.
    s = jnp.sum(x * w, axis=-1)                   # (BB, Tp)

    # Mask padded sequence positions out of the softmax denominator.
    if t_valid < t_padded:
        t_idx = jax.lax.broadcasted_iota(jnp.int32, s.shape, 1)
        s = jnp.where(t_idx < t_valid, s, -1e30)

    # Numerically-stable softmax over the sequence (lane) axis, unnormalised.
    m = jnp.max(s, axis=-1, keepdims=True)        # (BB, 1)
    p = jnp.exp(s - m)                            # (BB, Tp)
    denom = jnp.sum(p, axis=-1, keepdims=True)    # (BB, 1)

    # Weighted pooling over T on the MXU: (BB, 1, Tp) @ (BB, Tp, Hp) -> (BB, 1, Hp).
    pooled = jax.lax.dot_general(
        p[:, None, :], x,
        dimension_numbers=(((2,), (1,)), ((0,), (0,))),
        preferred_element_type=jnp.float32,
    )[:, 0, :]                                    # (BB, Hp)

    # Normalise once on the pooled (BB, Hp) tile (cheaper than scaling p over T).
    inv = pl.reciprocal(denom, approx=False)      # exact; approx=True is OK if looser tol
    o_ref[...] = (pooled * inv).astype(o_ref.dtype)


def self_attention(encoding, weight, *, target_tile_bytes=1 << 20):
    """encoding: (B, T, H); weight: (1, H) = nn.Linear(H, 1, bias=False).weight -> (B, H)."""
    B, T, H = encoding.shape
    assert weight.shape == (1, H)

    # Pad to TPU-friendly sizes: H -> lane multiple (128), T -> sublane multiple (8).
    Hp = _round_up(H, 128)
    Tp = _round_up(T, 8)

    # Batch rows per grid step: multiple of 8, sized so the encoding tile is ~1 MiB.
    # Double-buffered input then stays well inside scoped VMEM on v5e/v6e/v7x.
    row_bytes = Tp * Hp * encoding.dtype.itemsize
    bb = max(8, (target_tile_bytes // max(row_bytes, 1)) // 8 * 8)
    bb = min(bb, _round_up(B, 8))
    Bp = _round_up(B, bb)

    x = encoding
    if (Bp, Tp, Hp) != (B, T, H):
        x = jnp.pad(x, ((0, Bp - B), (0, Tp - T), (0, Hp - H)))
    w = weight if Hp == H else jnp.pad(weight, ((0, 0), (0, Hp - H)))

    kernel = functools.partial(self_attention_kernel, t_valid=T, t_padded=Tp)

    out = pl.pallas_call(
        kernel,
        out_shape=jax.ShapeDtypeStruct((Bp, Hp), encoding.dtype),
        grid_spec=pl.GridSpec(
            grid=(Bp // bb,),
            in_specs=[
                pl.BlockSpec((1, Hp), lambda i: (0, 0)),          # weight: VMEM-resident
                pl.BlockSpec((bb, Tp, Hp), lambda i: (i, 0, 0)),  # batch block of encodings
            ],
            out_specs=pl.BlockSpec((bb, Hp), lambda i: (i, 0)),
        ),
        compiler_params=pltpu.CompilerParams(
            dimension_semantics=("parallel",)),
    )(w, x)

    return out[:B, :H]


def self_attention_ref(encoding, weight):
    # Pure-JAX reference mirroring the PyTorch forward exactly.
    B, T, H = encoding.shape
    flat = encoding.reshape(-1, H)                  # (B*T, H)
    scores = (flat @ weight.T).reshape(B, T)        # (B, T)
    scores = jax.nn.softmax(scores, axis=1)
    return jnp.einsum("bt,bth->bh", scores, encoding)


if __name__ == "__main__":
    key = jax.random.PRNGKey(0)
    k_x, k_w = jax.random.split(key)

    B, T, H = 2, 8, 32
    encoding = jax.random.normal(k_x, (B, T, H), dtype=jnp.float32)
    # nn.Linear(H, 1, bias=False).weight has shape (1, H)
    bound = 1.0 / (H ** 0.5)
    weight = jax.random.uniform(k_w, (1, H), dtype=jnp.float32,
                                minval=-bound, maxval=bound)

    out = self_attention(encoding, weight)
    out = jax.block_until_ready(out)

    ref = self_attention_ref(encoding, weight)
    assert out.shape == (B, H)
    # Tolerance allows for possible multi-pass bf16 decomposition of the f32 MXU
    # matmul on some TPU generations; real layout/softmax bugs give O(0.1) errors.
    err = float(jnp.max(jnp.abs(out - ref)))
    assert err < 2e-3, f"mismatch vs reference: max abs err {err}"

    print("KERNEL_OK")
</pallas_src>

<mosaic_0001>
module attributes {stable_mosaic.version = 11 : i64} {
  func.func @self_attention_kernel(%arg0: i32, %arg1: memref<1x128xf32, #tpu.memory_space<vmem>>, %arg2: memref<8x8x128xf32, #tpu.memory_space<vmem>>, %arg3: memref<8x128xf32, #tpu.memory_space<vmem>>) attributes {dimension_semantics = [#tpu.dimension_semantics<parallel>], iteration_bounds = array<i64: 1>, scalar_prefetch = 0 : i64, scratch_operands = 0 : i64, tpu.core_type = #tpu.core_type<tc>, window_params = [{pipeline_mode = #tpu.pipeline_mode<synchronous>, transform_indices = @transform_0, window_bounds = array<i64: 1, 128>}, {transform_indices = @transform_1, window_bounds = array<i64: 8, 8, 128>}, {transform_indices = @transform_2, window_bounds = array<i64: 8, 128>}]} {
    %c0 = arith.constant 0 : index
    %c0_0 = arith.constant 0 : index
    %c0_1 = arith.constant 0 : index
    %0 = vector.load %arg2[%c0, %c0_0, %c0_1] : memref<8x8x128xf32, #tpu.memory_space<vmem>>, vector<8x8x128xf32>
    %c0_2 = arith.constant 0 : index
    %c0_3 = arith.constant 0 : index
    %1 = vector.load %arg1[%c0_2, %c0_3] : memref<1x128xf32, #tpu.memory_space<vmem>>, vector<1x128xf32>
    %2 = vector.shape_cast %1 : vector<1x128xf32> to vector<1x1x128xf32>
    %3 = vector.broadcast %2 : vector<1x1x128xf32> to vector<8x8x128xf32>
    %4 = arith.mulf %0, %3 : vector<8x8x128xf32>
    %cst = arith.constant dense<0.000000e+00> : vector<8x8xf32>
    %5 = vector.multi_reduction <add>, %4, %cst [2] : vector<8x8x128xf32> to vector<8x8xf32>
    %cst_4 = arith.constant dense<0xFF800000> : vector<8xf32>
    %6 = vector.multi_reduction <maximumf>, %5, %cst_4 [1] : vector<8x8xf32> to vector<8xf32>
    %7 = vector.shape_cast %6 : vector<8xf32> to vector<8x1xf32>
    %8 = vector.broadcast %7 : vector<8x1xf32> to vector<8x8xf32>
    %9 = arith.subf %5, %8 : vector<8x8xf32>
    %10 = math.exp %9 : vector<8x8xf32>
    %cst_5 = arith.constant dense<0.000000e+00> : vector<8xf32>
    %11 = vector.multi_reduction <add>, %10, %cst_5 [1] : vector<8x8xf32> to vector<8xf32>
    %12 = vector.shape_cast %11 : vector<8xf32> to vector<8x1xf32>
    %13 = vector.shape_cast %10 : vector<8x8xf32> to vector<8x1x8xf32>
    %cst_6 = arith.constant dense<0.000000e+00> : vector<8x1x128xf32>
    %14 = tpu.matmul %13, %0, %cst_6 {dimension_numbers = #tpu.dot_dimension_numbers<[2], [1], [1], [2], [0, 0, 0, 1, 1, 2], [0], [0]>} : vector<8x1x8xf32>, vector<8x8x128xf32>, vector<8x1x128xf32> -> vector<8x1x128xf32>
    %15 = vector.shape_cast %14 : vector<8x1x128xf32> to vector<8x128xf32>
    %16 = tpu.reciprocal %12 : vector<8x1xf32> -> vector<8x1xf32>
    %17 = vector.broadcast %16 : vector<8x1xf32> to vector<8x128xf32>
    %18 = arith.mulf %15, %17 : vector<8x128xf32>
    %c0_7 = arith.constant 0 : index
    %c0_8 = arith.constant 0 : index
    %19 = vector.load %arg3[%c0_7, %c0_8] : memref<8x128xf32, #tpu.memory_space<vmem>>, vector<8x128xf32>
    tpu.vector_store %arg3[%c0_7, %c0_8], %18 {strides = array<i32>} : memref<8x128xf32, #tpu.memory_space<vmem>>, vector<8x128xf32>,
    return
  }
  func.func @transform_0(%arg0: i32) -> (i32, i32) {
    %c0_i32 = arith.constant 0 : i32
    %c0_i32_0 = arith.constant 0 : i32
    %c0_i32_1 = arith.constant 0 : i32
    return %c0_i32, %c0_i32_0 : i32, i32
  }
  func.func @transform_1(%arg0: i32) -> (i32, i32, i32) {
    %c0_i32 = arith.constant 0 : i32
    %c0_i32_0 = arith.constant 0 : i32
    %c0_i32_1 = arith.constant 0 : i32
    return %arg0, %c0_i32, %c0_i32_0 : i32, i32, i32
  }
  func.func @transform_2(%arg0: i32) -> (i32, i32) {
    %c0_i32 = arith.constant 0 : i32
    %c0_i32_0 = arith.constant 0 : i32
    return %arg0, %c0_i32 : i32, i32
  }
}

</mosaic_0001>

<llo_original>
// kernel: tpu_custom_call.1
$region0: #{tpu_custom_call.1}
  #allocation0 [shape = 'u32[]', space=smem, size = 0x4, offset = 0x4, fixed_abs, tag = 'smem constant byte address 0x4 - core index']
  #allocation1 [shape = 'u32[144,128]{1,0:T(1,128)}', space=vmem, size = 0x12000, scoped, tag = 'internal scratch']
  %s0 = inlined_call_operand.hbm [shape: f32[1,128], index: 0, kind: input, shape index: {}]
  %s1 = inlined_call_operand.hbm [shape: f32[8,8,128], index: 1, kind: input, shape index: {}]
  %s2 = inlined_call_operand.hbm [shape: f32[8,128], index: 2, kind: output, shape index: {}]
  %s3 = sld [smem:[#allocation0]]
  $region26: #{tpu_custom_call.1} parent=0
    _
  %s5 = ssub.s32 1, %s3
  %s6 = scalar_select 0, %s5, %s3
  $region1: #{tpu_custom_call.1} parent=0
    #allocation2 [shape = 'u8[512]{0}', space=vmem, size = 0x400, scoped, tag = 'input window, operand 0, single buffered']
    #allocation3 [shape = 's32[1]{0}', space=sflag, size = 0x4, scoped, tag = 'scoped memory for tpu_custom_call.1']
    #allocation4 [shape = 's32[1]{0}', space=sflag, size = 0x4, scoped, tag = 'scoped memory for tpu_custom_call.1']
    #allocation5 [shape = 'u8[32768]{0}', space=vmem, size = 0x8000, scoped, tag = 'input window, operand 1, single buffered']
    #allocation6 [shape = 's32[1]{0}', space=sflag, size = 0x4, scoped, tag = 'scoped memory for tpu_custom_call.1']
    #allocation7 [shape = 'u8[4096]{0}', space=vmem, size = 0x1000, scoped, tag = 'output window, operand 0, single buffered']
    %7 = vsyncpa [#allocation3], 0
    %8 = vsyncpa [#allocation6], 0
    %9 = vsyncpa [#allocation4], 0
    // Predicated region
    $region2: #{tpu_custom_call.1} parent=1 // pred_check
      _
    $region3: #{tpu_custom_call.1} parent=1 // pred_check_branch
      %11 = sbr.rel (0) target = $region5
    $region4: #{tpu_custom_call.1} parent=1 // pred_region
      %s13 = ssub.s32 16, 16
      %14 = vsyncadd [#allocation3], %s13
      %s16 = sshll.u32 [#allocation2], 4
      %s17 = int_to_ptr.vmem [resolvable:$true] %s16
      %19 = dma.hbm_to_vmem [thread:$0]  %s0, 16, %s17, [#allocation3]
    $region5: #{tpu_custom_call.1} parent=1 // pred_fallthru
      _
    // Predicated region
    $region6: #{tpu_custom_call.1} parent=1 // pred_check
      _
    $region7: #{tpu_custom_call.1} parent=1 // pred_check_branch
      %21 = sbr.rel (0) target = $region9
    $region8: #{tpu_custom_call.1} parent=1 // pred_region
      %s23 = ssub.s32 1024, 1024
      %24 = vsyncadd [#allocation6], %s23
      %s25 = sshll.u32 [#allocation5], 4
      %s26 = int_to_ptr.vmem [resolvable:$true] %s25
      %31 = dma.hbm_to_vmem [thread:$0]  %s1, 1024, %s26, [#allocation6], 128, 128, 8
    $region9: #{tpu_custom_call.1} parent=1 // pred_fallthru
      _
    // Predicated region
    $region10: #{tpu_custom_call.1} parent=1 // pred_check
      _
    $region11: #{tpu_custom_call.1} parent=1 // pred_check_branch
      %33 = sbr.rel (0) target = $region13
    $region12: #{tpu_custom_call.1} parent=1 // pred_region
      %34 = dma.done [#allocation3], 16
    $region13: #{tpu_custom_call.1} parent=1 // pred_fallthru
      _
    // Predicated region
    $region14: #{tpu_custom_call.1} parent=1 // pred_check
      _
    $region15: #{tpu_custom_call.1} parent=1 // pred_check_branch
      %36 = sbr.rel (0) target = $region17
    $region16: #{tpu_custom_call.1} parent=1 // pred_region
      %37 = dma.done [#allocation6], 1024
    $region17: #{tpu_custom_call.1} parent=1 // pred_fallthru
      _
    %v38 = vld [vmem:[#allocation5] sm:$0xff]
    %v39 = vld [vmem:[#allocation5 + $0x8] sm:$0xff]
    %v40 = vld [vmem:[#allocation5 + $0x10] sm:$0xff]
    %v41 = vld [vmem:[#allocation5 + $0x18] sm:$0xff]
    %v42 = vld [vmem:[#allocation5 + $0x20] sm:$0xff]
    %v43 = vld [vmem:[#allocation5 + $0x28] sm:$0xff]
    %v44 = vld [vmem:[#allocation5 + $0x30] sm:$0xff]
    %v45 = vld [vmem:[#allocation5 + $0x38] sm:$0xff]
    %v46 = vld [vmem:[#allocation2] sm:$0x1]
    %v48 = vlaneseq
    %v49 = vshrl.u32 %v48, 7
    %v50 = vsub.s32 0, %v49
    %v51 = vrot.slane %v46, %v50
    %v53 = vmul.f32 %v38, %v51
    %v54 = vmul.f32 %v39, %v51
    %v55 = vmul.f32 %v40, %v51
    %v56 = vmul.f32 %v41, %v51
    %v57 = vmul.f32 %v42, %v51
    %v58 = vmul.f32 %v43, %v51
    %v59 = vmul.f32 %v44, %v51
    %v60 = vmul.f32 %v45, %v51
    %61 = vadd.xlane.f32.xlu0 %v53
    %v62 = vpop.xlane.xlu0 %61
    %63 = vadd.xlane.f32.xlu0 %v54
    %v64 = vpop.xlane.xlu0 %63
    %65 = vadd.xlane.f32.xlu0 %v55
    %v66 = vpop.xlane.xlu0 %65
    %67 = vadd.xlane.f32.xlu0 %v56
    %v68 = vpop.xlane.xlu0 %67
    %69 = vadd.xlane.f32.xlu0 %v57
    %v70 = vpop.xlane.xlu0 %69
    %71 = vadd.xlane.f32.xlu0 %v58
    %v72 = vpop.xlane.xlu0 %71
    %73 = vadd.xlane.f32.xlu0 %v59
    %v74 = vpop.xlane.xlu0 %73
    %75 = vadd.xlane.f32.xlu0 %v60
    %v76 = vpop.xlane.xlu0 %75
    %v85 = vlaneseq
    %v86 = vand.u32 %v85, 127
    %v87 = vlaneseq
    %v88 = vshrl.u32 %v87, 7
    %v89 = vsub.s32 %v86, %v88
    %v90 = vrot.slane %v62, %v89
    %v91 = vlaneseq
    %v92 = vshrl.u32 %v91, 7
    %v93 = vsub.s32 %v86, %v92
    %v94 = vrot.slane %v64, %v93
    %v95 = vlaneseq
    %v96 = vshrl.u32 %v95, 7
    %v97 = vsub.s32 %v86, %v96
    %v98 = vrot.slane %v66, %v97
    %v99 = vlaneseq
    %v100 = vshrl.u32 %v99, 7
    %v101 = vsub.s32 %v86, %v100
    %v102 = vrot.slane %v68, %v101
    %v103 = vlaneseq
    %v104 = vshrl.u32 %v103, 7
    %v105 = vsub.s32 %v86, %v104
    %v106 = vrot.slane %v70, %v105
    %v107 = vlaneseq
    %v108 = vshrl.u32 %v107, 7
    %v109 = vsub.s32 %v86, %v108
    %v110 = vrot.slane %v72, %v109
    %v111 = vlaneseq
    %v112 = vshrl.u32 %v111, 7
    %v113 = vsub.s32 %v86, %v112
    %v114 = vrot.slane %v74, %v113
    %v115 = vlaneseq
    %v116 = vshrl.u32 %v115, 7
    %v117 = vsub.s32 %v86, %v116
    %v118 = vrot.slane %v76, %v117
    %vm119 = vcmask 1041409
    %v120 = vsel %vm119, %v94, %v90
    %vm121 = vcmask 1042434
    %v122 = vsel %vm121, %v98, %v120
    %vm123 = vcmask 1043459
    %v124 = vsel %vm123, %v102, %v122
    %vm125 = vcmask 1044484
    %v126 = vsel %vm125, %v106, %v124
    %vm127 = vcmask 1045509
    %v128 = vsel %vm127, %v110, %v126
    %vm129 = vcmask 1046534
    %v130 = vsel %vm129, %v114, %v128
    %vm131 = vcmask 1047559
    %v132 = vsel %vm131, %v118, %v130
    %vm134 = vcmask 64512
    %v135 = vsel %vm134, %v132, -inf
    %136 = vmax.xlane.f32.xlu0 %v135
    %v137 = vpop.xlane.xlu0 %136
    %v139 = vlaneseq
    %v140 = vshrl.u32 %v139, 7
    %v141 = vsub.s32 0, %v140
    %v142 = vrot.slane %v137, %v141
    %v143 = vlaneseq
    %v144 = vshrl.u32 %v143, 7
    %v145 = vsub.s32 1, %v144
    %v146 = vrot.slane %v137, %v145
    %v147 = vlaneseq
    %v148 = vshrl.u32 %v147, 7
    %v149 = vsub.s32 2, %v148
    %v150 = vrot.slane %v137, %v149
    %v151 = vlaneseq
    %v152 = vshrl.u32 %v151, 7
    %v153 = vsub.s32 3, %v152
    %v154 = vrot.slane %v137, %v153
    %v155 = vlaneseq
    %v156 = vshrl.u32 %v155, 7
    %v157 = vsub.s32 4, %v156
    %v158 = vrot.slane %v137, %v157
    %v159 = vlaneseq
    %v160 = vshrl.u32 %v159, 7
    %v161 = vsub.s32 5, %v160
    %v162 = vrot.slane %v137, %v161
    %v163 = vlaneseq
    %v164 = vshrl.u32 %v163, 7
    %v165 = vsub.s32 6, %v164
    %v166 = vrot.slane %v137, %v165
    %v167 = vlaneseq
    %v168 = vshrl.u32 %v167, 7
    %v169 = vsub.s32 7, %v168
    %v170 = vrot.slane %v137, %v169
    %v179 = vsub.f32 %v62, %v142
    %v180 = vsub.f32 %v64, %v146
    %v181 = vsub.f32 %v66, %v150
    %v182 = vsub.f32 %v68, %v154
    %v183 = vsub.f32 %v70, %v158
    %v184 = vsub.f32 %v72, %v162
    %v185 = vsub.f32 %v74, %v166
    %v186 = vsub.f32 %v76, %v170
    %v187 = vmul.f32 %v179, 1.442695
    %v188 = vpow.pop %v187
    %v189 = vmul.f32 %v180, 1.442695
    %v190 = vpow.pop %v189
    %v191 = vmul.f32 %v181, 1.442695
    %v192 = vpow.pop %v191
    %v193 = vmul.f32 %v182, 1.442695
    %v194 = vpow.pop %v193
    %v195 = vmul.f32 %v183, 1.442695
    %v196 = vpow.pop %v195
    %v197 = vmul.f32 %v184, 1.442695
    %v198 = vpow.pop %v197
    %v199 = vmul.f32 %v185, 1.442695
    %v200 = vpow.pop %v199
    %v201 = vmul.f32 %v186, 1.442695
    %v202 = vpow.pop %v201
    %211 = vset.pattern.permute.xlu0 0
    %212 = vperm.xlu0 %211, %v188
    %v213 = vpop.permute.xlu0 %212
    %214 = vset.pattern.permute.xlu0 0
    %215 = vperm.xlu0 %214, %v190
    %v216 = vpop.permute.xlu0 %215
    %217 = vset.pattern.permute.xlu0 0
    %218 = vperm.xlu0 %217, %v192
    %v219 = vpop.permute.xlu0 %218
    %220 = vset.pattern.permute.xlu0 0
    %221 = vperm.xlu0 %220, %v194
    %v222 = vpop.permute.xlu0 %221
    %223 = vset.pattern.permute.xlu0 0
    %224 = vperm.xlu0 %223, %v196
    %v225 = vpop.permute.xlu0 %224
    %226 = vset.pattern.permute.xlu0 0
    %227 = vperm.xlu0 %226, %v198
    %v228 = vpop.permute.xlu0 %227
    %229 = vset.pattern.permute.xlu0 0
    %230 = vperm.xlu0 %229, %v200
    %v231 = vpop.permute.xlu0 %230
    %232 = vset.pattern.permute.xlu0 0
    %233 = vperm.xlu0 %232, %v202
    %v234 = vpop.permute.xlu0 %233
    %v235 = vlaneseq
    %v236 = vshrl.u32 %v235, 7
    %v237 = vsub.s32 %v86, %v236
    %v238 = vrot.slane %v213, %v237
    %v239 = vlaneseq
    %v240 = vshrl.u32 %v239, 7
    %v241 = vsub.s32 %v86, %v240
    %v242 = vrot.slane %v216, %v241
    %v243 = vlaneseq
    %v244 = vshrl.u32 %v243, 7
    %v245 = vsub.s32 %v86, %v244
    %v246 = vrot.slane %v219, %v245
    %v247 = vlaneseq
    %v248 = vshrl.u32 %v247, 7
    %v249 = vsub.s32 %v86, %v248
    %v250 = vrot.slane %v222, %v249
    %v251 = vlaneseq
    %v252 = vshrl.u32 %v251, 7
    %v253 = vsub.s32 %v86, %v252
    %v254 = vrot.slane %v225, %v253
    %v255 = vlaneseq
    %v256 = vshrl.u32 %v255, 7
    %v257 = vsub.s32 %v86, %v256
    %v258 = vrot.slane %v228, %v257
    %v259 = vlaneseq
    %v260 = vshrl.u32 %v259, 7
    %v261 = vsub.s32 %v86, %v260
    %v262 = vrot.slane %v231, %v261
    %v263 = vlaneseq
    %v264 = vshrl.u32 %v263, 7
    %v265 = vsub.s32 %v86, %v264
    %v266 = vrot.slane %v234, %v265
    %v267 = vsel %vm119, %v242, %v238
    %v268 = vsel %vm121, %v246, %v267
    %v269 = vsel %vm123, %v250, %v268
    %v270 = vsel %vm125, %v254, %v269
    %v271 = vsel %vm127, %v258, %v270
    %v272 = vsel %vm129, %v262, %v271
    %v273 = vsel %vm131, %v266, %v272
    %v275 = vsel %vm134, %v273, 0.0
    %276 = vadd.xlane.f32.xlu0 %v275
    %v277 = vpop.xlane.xlu0 %276
    %v278 = vsel %vm134, %v238, 0
    %280 = vmatprep.subr.mxu0 0.0
    %281 = vmatpush1.msra.mxu0 %v38
    %282 = vmatprep.subr.mxu0 0.0
    %283 = vmatpush1.msra.mxu0 0.0
    %284 = vmatprep.subr.mxu0 0.0
    %285 = vmatpush1.msra.mxu0 0.0
    %286 = vmatprep.subr.mxu0 0.0
    %287 = vmatpush1.msra.mxu0 0.0
    %288 = vmatprep.subr.mxu0 0.0
    %289 = vmatpush1.msra.mxu0 0.0
    %290 = vmatprep.subr.mxu0 0.0
    %291 = vmatpush1.msra.mxu0 0.0
    %292 = vmatprep.subr.mxu0 0.0
    %293 = vmatpush1.msra.mxu0 0.0
    %294 = vmatprep.subr.mxu0 0.0
    %295 = vmatpush1.msra.mxu0 0.0
    %296 = vmatprep.subr.mxu0 0.0
    %297 = vmatpush1.msra.mxu0 0.0
    %298 = vmatprep.subr.mxu0 0.0
    %299 = vmatpush1.msra.mxu0 0.0
    %300 = vmatprep.subr.mxu0 0.0
    %301 = vmatpush1.msra.mxu0 0.0
    %302 = vmatprep.subr.mxu0 0.0
    %303 = vmatpush1.msra.mxu0 0.0
    %304 = vmatprep.subr.mxu0 0.0
    %305 = vmatpush1.msra.mxu0 0.0
    %306 = vmatprep.subr.mxu0 0.0
    %307 = vmatpush1.msra.mxu0 0.0
    %308 = vmatprep.subr.mxu0 0.0
    %309 = vmatpush1.msra.mxu0 0.0
    %310 = vmatprep.subr.mxu0 0.0
    %311 = vmatpush1.msra.mxu0 0.0
    %312 = vmatprep.subr.mxu0 0.0
    %313 = vmatpush1.msra.mxu0 0.0
    %314 = vmatprep.subr.mxu0 0.0
    %315 = vmatpush1.msra.mxu0 0.0
    %316 = vmatprep.subr.mxu0 0.0
    %317 = vmatpush1.msra.mxu0 0.0
    %318 = vmatprep.subr.mxu0 0.0
    %319 = vmatpush1.msra.mxu0 0.0
    %320 = vmatprep.subr.mxu0 0.0
    %321 = vmatpush1.msra.mxu0 0.0
    %322 = vmatprep.subr.mxu0 0.0
    %323 = vmatpush1.msra.mxu0 0.0
    %324 = vmatprep.subr.mxu0 0.0
    %325 = vmatpush1.msra.mxu0 0.0
    %326 = vmatprep.subr.mxu0 0.0
    %327 = vmatpush1.msra.mxu0 0.0
    %328 = vmatprep.subr.mxu0 0.0
    %329 = vmatpush1.msra.mxu0 0.0
    %330 = vmatprep.subr.mxu0 0.0
    %331 = vmatpush1.msra.mxu0 0.0
    %332 = vmatprep.subr.mxu0 0.0
    %333 = vmatpush1.msra.mxu0 0.0
    %334 = vmatprep.subr.mxu0 0.0
    %335 = vmatpush1.msra.mxu0 0.0
    %336 = vmatprep.subr.mxu0 0.0
    %337 = vmatpush1.msra.mxu0 0.0
    %338 = vmatprep.subr.mxu0 0.0
    %339 = vmatpush1.msra.mxu0 0.0
    %340 = vmatprep.subr.mxu0 0.0
    %341 = vmatpush1.msra.mxu0 0.0
    %342 = vmatprep.subr.mxu0 0.0
    %343 = vmatpush1.msra.mxu0 0.0
    %344 = vmatprep.mubr.f32.mxu0 0.0
    %345 = vmatmul.mubr.f32.gmra.mrb[0].mxu0 %v278
    %v346 = vpop.f32.mrb[0].mxu0
    %v347 = vadd.f32 0.0, %v346
    %v348 = vpop.f32.mrb[0].mxu0
    %349 = vdwg.mxu0
    %v350 = vsel %vm134, %v242, 0
    %352 = vmatprep.subr.mxu0 0.0
    %353 = vmatpush1.msra.mxu0 %v39
    %354 = vmatprep.subr.mxu0 0.0
    %355 = vmatpush1.msra.mxu0 0.0
    %356 = vmatprep.subr.mxu0 0.0
    %357 = vmatpush1.msra.mxu0 0.0
    %358 = vmatprep.subr.mxu0 0.0
    %359 = vmatpush1.msra.mxu0 0.0
    %360 = vmatprep.subr.mxu0 0.0
    %361 = vmatpush1.msra.mxu0 0.0
    %362 = vmatprep.subr.mxu0 0.0
    %363 = vmatpush1.msra.mxu0 0.0
    %364 = vmatprep.subr.mxu0 0.0
    %365 = vmatpush1.msra.mxu0 0.0
    %366 = vmatprep.subr.mxu0 0.0
    %367 = vmatpush1.msra.mxu0 0.0
    %368 = vmatprep.subr.mxu0 0.0
    %369 = vmatpush1.msra.mxu0 0.0
    %370 = vmatprep.subr.mxu0 0.0
    %371 = vmatpush1.msra.mxu0 0.0
    %372 = vmatprep.subr.mxu0 0.0
    %373 = vmatpush1.msra.mxu0 0.0
    %374 = vmatprep.subr.mxu0 0.0
    %375 = vmatpush1.msra.mxu0 0.0
    %376 = vmatprep.subr.mxu0 0.0
    %377 = vmatpush1.msra.mxu0 0.0
    %378 = vmatprep.subr.mxu0 0.0
    %379 = vmatpush1.msra.mxu0 0.0
    %380 = vmatprep.subr.mxu0 0.0
    %381 = vmatpush1.msra.mxu0 0.0
    %382 = vmatprep.subr.mxu0 0.0
    %383 = vmatpush1.msra.mxu0 0.0
    %384 = vmatprep.subr.mxu0 0.0
    %385 = vmatpush1.msra.mxu0 0.0
    %386 = vmatprep.subr.mxu0 0.0
    %387 = vmatpush1.msra.mxu0 0.0
    %388 = vmatprep.subr.mxu0 0.0
    %389 = vmatpush1.msra.mxu0 0.0
    %390 = vmatprep.subr.mxu0 0.0
    %391 = vmatpush1.msra.mxu0 0.0
    %392 = vmatprep.subr.mxu0 0.0
    %393 = vmatpush1.msra.mxu0 0.0
    %394 = vmatprep.subr.mxu0 0.0
    %395 = vmatpush1.msra.mxu0 0.0
    %396 = vmatprep.subr.mxu0 0.0
    %397 = vmatpush1.msra.mxu0 0.0
    %398 = vmatprep.subr.mxu0 0.0
    %399 = vmatpush1.msra.mxu0 0.0
    %400 = vmatprep.subr.mxu0 0.0
    %401 = vmatpush1.msra.mxu0 0.0
    %402 = vmatprep.subr.mxu0 0.0
    %403 = vmatpush1.msra.mxu0 0.0
    %404 = vmatprep.subr.mxu0 0.0
    %405 = vmatpush1.msra.mxu0 0.0
    %406 = vmatprep.subr.mxu0 0.0
    %407 = vmatpush1.msra.mxu0 0.0
    %408 = vmatprep.subr.mxu0 0.0
    %409 = vmatpush1.msra.mxu0 0.0
    %410 = vmatprep.subr.mxu0 0.0
    %411 = vmatpush1.msra.mxu0 0.0
    %412 = vmatprep.subr.mxu0 0.0
    %413 = vmatpush1.msra.mxu0 0.0
    %414 = vmatprep.subr.mxu0 0.0
    %415 = vmatpush1.msra.mxu0 0.0
    %416 = vmatprep.mubr.f32.mxu0 0.0
    %417 = vmatmul.mubr.f32.gmra.mrb[0].mxu0 %v350
    %v418 = vpop.f32.mrb[0].mxu0
    %v419 = vadd.f32 0.0, %v418
    %v420 = vpop.f32.mrb[0].mxu0
    %421 = vdwg.mxu0
    %v422 = vsel %vm134, %v246, 0
    %424 = vmatprep.subr.mxu0 0.0
    %425 = vmatpush1.msra.mxu0 %v40
    %426 = vmatprep.subr.mxu0 0.0
    %427 = vmatpush1.msra.mxu0 0.0
    %428 = vmatprep.subr.mxu0 0.0
    %429 = vmatpush1.msra.mxu0 0.0
    %430 = vmatprep.subr.mxu0 0.0
    %431 = vmatpush1.msra.mxu0 0.0
    %432 = vmatprep.subr.mxu0 0.0
    %433 = vmatpush1.msra.mxu0 0.0
    %434 = vmatprep.subr.mxu0 0.0
    %435 = vmatpush1.msra.mxu0 0.0
    %436 = vmatprep.subr.mxu0 0.0
    %437 = vmatpush1.msra.mxu0 0.0
    %438 = vmatprep.subr.mxu0 0.0
    %439 = vmatpush1.msra.mxu0 0.0
    %440 = vmatprep.subr.mxu0 0.0
    %441 = vmatpush1.msra.mxu0 0.0
    %442 = vmatprep.subr.mxu0 0.0
    %443 = vmatpush1.msra.mxu0 0.0
    %444 = vmatprep.subr.mxu0 0.0
    %445 = vmatpush1.msra.mxu0 0.0
    %446 = vmatprep.subr.mxu0 0.0
    %447 = vmatpush1.msra.mxu0 0.0
    %448 = vmatprep.subr.mxu0 0.0
    %449 = vmatpush1.msra.mxu0 0.0
    %450 = vmatprep.subr.mxu0 0.0
    %451 = vmatpush1.msra.mxu0 0.0
    %452 = vmatprep.subr.mxu0 0.0
    %453 = vmatpush1.msra.mxu0 0.0
    %454 = vmatprep.subr.mxu0 0.0
    %455 = vmatpush1.msra.mxu0 0.0
    %456 = vmatprep.subr.mxu0 0.0
    %457 = vmatpush1.msra.mxu0 0.0
    %458 = vmatprep.subr.mxu0 0.0
    %459 = vmatpush1.msra.mxu0 0.0
    %460 = vmatprep.subr.mxu0 0.0
    %461 = vmatpush1.msra.mxu0 0.0
    %462 = vmatprep.subr.mxu0 0.0
    %463 = vmatpush1.msra.mxu0 0.0
    %464 = vmatprep.subr.mxu0 0.0
    %465 = vmatpush1.msra.mxu0 0.0
    %466 = vmatprep.subr.mxu0 0.0
    %467 = vmatpush1.msra.mxu0 0.0
    %468 = vmatprep.subr.mxu0 0.0
    %469 = vmatpush1.msra.mxu0 0.0
    %470 = vmatprep.subr.mxu0 0.0
    %471 = vmatpush1.msra.mxu0 0.0
    %472 = vmatprep.subr.mxu0 0.0
    %473 = vmatpush1.msra.mxu0 0.0
    %474 = vmatprep.subr.mxu0 0.0
    %475 = vmatpush1.msra.mxu0 0.0
    %476 = vmatprep.subr.mxu0 0.0
    %477 = vmatpush1.msra.mxu0 0.0
    %478 = vmatprep.subr.mxu0 0.0
    %479 = vmatpush1.msra.mxu0 0.0
    %480 = vmatprep.subr.mxu0 0.0
    %481 = vmatpush1.msra.mxu0 0.0
    %482 = vmatprep.subr.mxu0 0.0
    %483 = vmatpush1.msra.mxu0 0.0
    %484 = vmatprep.subr.mxu0 0.0
    %485 = vmatpush1.msra.mxu0 0.0
    %486 = vmatprep.subr.mxu0 0.0
    %487 = vmatpush1.msra.mxu0 0.0
    %488 = vmatprep.mubr.f32.mxu0 0.0
    %489 = vmatmul.mubr.f32.gmra.mrb[0].mxu0 %v422
    %v490 = vpop.f32.mrb[0].mxu0
    %v491 = vadd.f32 0.0, %v490
    %v492 = vpop.f32.mrb[0].mxu0
    %493 = vdwg.mxu0
    %v494 = vsel %vm134, %v250, 0
    %496 = vmatprep.subr.mxu0 0.0
    %497 = vmatpush1.msra.mxu0 %v41
    %498 = vmatprep.subr.mxu0 0.0
    %499 = vmatpush1.msra.mxu0 0.0
    %500 = vmatprep.subr.mxu0 0.0
    %501 = vmatpush1.msra.mxu0 0.0
    %502 = vmatprep.subr.mxu0 0.0
    %503 = vmatpush1.msra.mxu0 0.0
    %504 = vmatprep.subr.mxu0 0.0
    %505 = vmatpush1.msra.mxu0 0.0
    %506 = vmatprep.subr.mxu0 0.0
    %507 = vmatpush1.msra.mxu0 0.0
    %508 = vmatprep.subr.mxu0 0.0
    %509 = vmatpush1.msra.mxu0 0.0
    %510 = vmatprep.subr.mxu0 0.0
    %511 = vmatpush1.msra.mxu0 0.0
    %512 = vmatprep.subr.mxu0 0.0
    %513 = vmatpush1.msra.mxu0 0.0
    %514 = vmatprep.subr.mxu0 0.0
    %515 = vmatpush1.msra.mxu0 0.0
    %516 = vmatprep.subr.mxu0 0.0
    %517 = vmatpush1.msra.mxu0 0.0
    %518 = vmatprep.subr.mxu0 0.0
    %519 = vmatpush1.msra.mxu0 0.0
    %520 = vmatprep.subr.mxu0 0.0
    %521 = vmatpush1.msra.mxu0 0.0
    %522 = vmatprep.subr.mxu0 0.0
    %523 = vmatpush1.msra.mxu0 0.0
    %524 = vmatprep.subr.mxu0 0.0
    %525 = vmatpush1.msra.mxu0 0.0
    %526 = vmatprep.subr.mxu0 0.0
    %527 = vmatpush1.msra.mxu0 0.0
    %528 = vmatprep.subr.mxu0 0.0
    %529 = vmatpush1.msra.mxu0 0.0
    %530 = vmatprep.subr.mxu0 0.0
    %531 = vmatpush1.msra.mxu0 0.0
    %532 = vmatprep.subr.mxu0 0.0
    %533 = vmatpush1.msra.mxu0 0.0
    %534 = vmatprep.subr.mxu0 0.0
    %535 = vmatpush1.msra.mxu0 0.0
    %536 = vmatprep.subr.mxu0 0.0
    %537 = vmatpush1.msra.mxu0 0.0
    %538 = vmatprep.subr.mxu0 0.0
    %539 = vmatpush1.msra.mxu0 0.0
    %540 = vmatprep.subr.mxu0 0.0
    %541 = vmatpush1.msra.mxu0 0.0
    %542 = vmatprep.subr.mxu0 0.0
    %543 = vmatpush1.msra.mxu0 0.0
    %544 = vmatprep.subr.mxu0 0.0
    %545 = vmatpush1.msra.mxu0 0.0
    %546 = vmatprep.subr.mxu0 0.0
    %547 = vmatpush1.msra.mxu0 0.0
    %548 = vmatprep.subr.mxu0 0.0
    %549 = vmatpush1.msra.mxu0 0.0
    %550 = vmatprep.subr.mxu0 0.0
    %551 = vmatpush1.msra.mxu0 0.0
    %552 = vmatprep.subr.mxu0 0.0
    %553 = vmatpush1.msra.mxu0 0.0
    %554 = vmatprep.subr.mxu0 0.0
    %555 = vmatpush1.msra.mxu0 0.0
    %556 = vmatprep.subr.mxu0 0.0
    %557 = vmatpush1.msra.mxu0 0.0
    %558 = vmatprep.subr.mxu0 0.0
    %559 = vmatpush1.msra.mxu0 0.0
    %560 = vmatprep.mubr.f32.mxu0 0.0
    %561 = vmatmul.mubr.f32.gmra.mrb[0].mxu0 %v494
    %v562 = vpop.f32.mrb[0].mxu0
    %v563 = vadd.f32 0.0, %v562
    %v564 = vpop.f32.mrb[0].mxu0
    %565 = vdwg.mxu0
    %v566 = vsel %vm134, %v254, 0
    %568 = vmatprep.subr.mxu0 0.0
    %569 = vmatpush1.msra.mxu0 %v42
    %570 = vmatprep.subr.mxu0 0.0
    %571 = vmatpush1.msra.mxu0 0.0
    %572 = vmatprep.subr.mxu0 0.0
    %573 = vmatpush1.msra.mxu0 0.0
    %574 = vmatprep.subr.mxu0 0.0
    %575 = vmatpush1.msra.mxu0 0.0
    %576 = vmatprep.subr.mxu0 0.0
    %577 = vmatpush1.msra.mxu0 0.0
    %578 = vmatprep.subr.mxu0 0.0
    %579 = vmatpush1.msra.mxu0 0.0
    %580 = vmatprep.subr.mxu0 0.0
    %581 = vmatpush1.msra.mxu0 0.0
    %582 = vmatprep.subr.mxu0 0.0
    %583 = vmatpush1.msra.mxu0 0.0
    %584 = vmatprep.subr.mxu0 0.0
    %585 = vmatpush1.msra.mxu0 0.0
    %586 = vmatprep.subr.mxu0 0.0
    %587 = vmatpush1.msra.mxu0 0.0
    %588 = vmatprep.subr.mxu0 0.0
    %589 = vmatpush1.msra.mxu0 0.0
    %590 = vmatprep.subr.mxu0 0.0
    %591 = vmatpush1.msra.mxu0 0.0
    %592 = vmatprep.subr.mxu0 0.0
    %593 = vmatpush1.msra.mxu0 0.0
    %594 = vmatprep.subr.mxu0 0.0
    %595 = vmatpush1.msra.mxu0 0.0
    %596 = vmatprep.subr.mxu0 0.0
    %597 = vmatpush1.msra.mxu0 0.0
    %598 = vmatprep.subr.mxu0 0.0
    %599 = vmatpush1.msra.mxu0 0.0
    %600 = vmatprep.subr.mxu0 0.0
    %601 = vmatpush1.msra.mxu0 0.0
    %602 = vmatprep.subr.mxu0 0.0
    %603 = vmatpush1.msra.mxu0 0.0
    %604 = vmatprep.subr.mxu0 0.0
    %605 = vmatpush1.msra.mxu0 0.0
    %606 = vmatprep.subr.mxu0 0.0
    %607 = vmatpush1.msra.mxu0 0.0
    %608 = vmatprep.subr.mxu0 0.0
    %609 = vmatpush1.msra.mxu0 0.0
    %610 = vmatprep.subr.mxu0 0.0
    %611 = vmatpush1.msra.mxu0 0.0
    %612 = vmatprep.subr.mxu0 0.0
    %613 = vmatpush1.msra.mxu0 0.0
    %614 = vmatprep.subr.mxu0 0.0
    %615 = vmatpush1.msra.mxu0 0.0
    %616 = vmatprep.subr.mxu0 0.0
    %617 = vmatpush1.msra.mxu0 0.0
    %618 = vmatprep.subr.mxu0 0.0
    %619 = vmatpush1.msra.mxu0 0.0
    %620 = vmatprep.subr.mxu0 0.0
    %621 = vmatpush1.msra.mxu0 0.0
    %622 = vmatprep.subr.mxu0 0.0
    %623 = vmatpush1.msra.mxu0 0.0
    %624 = vmatprep.subr.mxu0 0.0
    %625 = vmatpush1.msra.mxu0 0.0
    %626 = vmatprep.subr.mxu0 0.0
    %627 = vmatpush1.msra.mxu0 0.0
    %628 = vmatprep.subr.mxu0 0.0
    %629 = vmatpush1.msra.mxu0 0.0
    %630 = vmatprep.subr.mxu0 0.0
    %631 = vmatpush1.msra.mxu0 0.0
    %632 = vmatprep.mubr.f32.mxu0 0.0
    %633 = vmatmul.mubr.f32.gmra.mrb[0].mxu0 %v566
    %v634 = vpop.f32.mrb[0].mxu0
    %v635 = vadd.f32 0.0, %v634
    %v636 = vpop.f32.mrb[0].mxu0
    %637 = vdwg.mxu0
    %v638 = vsel %vm134, %v258, 0
    %640 = vmatprep.subr.mxu0 0.0
    %641 = vmatpush1.msra.mxu0 %v43
    %642 = vmatprep.subr.mxu0 0.0
    %643 = vmatpush1.msra.mxu0 0.0
    %644 = vmatprep.subr.mxu0 0.0
    %645 = vmatpush1.msra.mxu0 0.0
    %646 = vmatprep.subr.mxu0 0.0
    %647 = vmatpush1.msra.mxu0 0.0
    %648 = vmatprep.subr.mxu0 0.0
    %649 = vmatpush1.msra.mxu0 0.0
    %650 = vmatprep.subr.mxu0 0.0
    %651 = vmatpush1.msra.mxu0 0.0
    %652 = vmatprep.subr.mxu0 0.0
    %653 = vmatpush1.msra.mxu0 0.0
    %654 = vmatprep.subr.mxu0 0.0
    %655 = vmatpush1.msra.mxu0 0.0
    %656 = vmatprep.subr.mxu0 0.0
    %657 = vmatpush1.msra.mxu0 0.0
    %658 = vmatprep.subr.mxu0 0.0
    %659 = vmatpush1.msra.mxu0 0.0
    %660 = vmatprep.subr.mxu0 0.0
    %661 = vmatpush1.msra.mxu0 0.0
    %662 = vmatprep.subr.mxu0 0.0
    %663 = vmatpush1.msra.mxu0 0.0
    %664 = vmatprep.subr.mxu0 0.0
    %665 = vmatpush1.msra.mxu0 0.0
    %666 = vmatprep.subr.mxu0 0.0
    %667 = vmatpush1.msra.mxu0 0.0
    %668 = vmatprep.subr.mxu0 0.0
    %669 = vmatpush1.msra.mxu0 0.0
    %670 = vmatprep.subr.mxu0 0.0
    %671 = vmatpush1.msra.mxu0 0.0
    %672 = vmatprep.subr.mxu0 0.0
    %673 = vmatpush1.msra.mxu0 0.0
    %674 = vmatprep.subr.mxu0 0.0
    %675 = vmatpush1.msra.mxu0 0.0
    %676 = vmatprep.subr.mxu0 0.0
    %677 = vmatpush1.msra.mxu0 0.0
    %678 = vmatprep.subr.mxu0 0.0
    %679 = vmatpush1.msra.mxu0 0.0
    %680 = vmatprep.subr.mxu0 0.0
    %681 = vmatpush1.msra.mxu0 0.0
    %682 = vmatprep.subr.mxu0 0.0
    %683 = vmatpush1.msra.mxu0 0.0
    %684 = vmatprep.subr.mxu0 0.0
    %685 = vmatpush1.msra.mxu0 0.0
    %686 = vmatprep.subr.mxu0 0.0
    %687 = vmatpush1.msra.mxu0 0.0
    %688 = vmatprep.subr.mxu0 0.0
    %689 = vmatpush1.msra.mxu0 0.0
    %690 = vmatprep.subr.mxu0 0.0
    %691 = vmatpush1.msra.mxu0 0.0
    %692 = vmatprep.subr.mxu0 0.0
    %693 = vmatpush1.msra.mxu0 0.0
    %694 = vmatprep.subr.mxu0 0.0
    %695 = vmatpush1.msra.mxu0 0.0
    %696 = vmatprep.subr.mxu0 0.0
    %697 = vmatpush1.msra.mxu0 0.0
    %698 = vmatprep.subr.mxu0 0.0
    %699 = vmatpush1.msra.mxu0 0.0
    %700 = vmatprep.subr.mxu0 0.0
    %701 = vmatpush1.msra.mxu0 0.0
    %702 = vmatprep.subr.mxu0 0.0
    %703 = vmatpush1.msra.mxu0 0.0
    %704 = vmatprep.mubr.f32.mxu0 0.0
    %705 = vmatmul.mubr.f32.gmra.mrb[0].mxu0 %v638
    %v706 = vpop.f32.mrb[0].mxu0
    %v707 = vadd.f32 0.0, %v706
    %v708 = vpop.f32.mrb[0].mxu0
    %709 = vdwg.mxu0
    %v710 = vsel %vm134, %v262, 0
    %712 = vmatprep.subr.mxu0 0.0
    %713 = vmatpush1.msra.mxu0 %v44
    %714 = vmatprep.subr.mxu0 0.0
    %715 = vmatpush1.msra.mxu0 0.0
    %716 = vmatprep.subr.mxu0 0.0
    %717 = vmatpush1.msra.mxu0 0.0
    %718 = vmatprep.subr.mxu0 0.0
    %719 = vmatpush1.msra.mxu0 0.0
    %720 = vmatprep.subr.mxu0 0.0
    %721 = vmatpush1.msra.mxu0 0.0
    %722 = vmatprep.subr.mxu0 0.0
    %723 = vmatpush1.msra.mxu0 0.0
    %724 = vmatprep.subr.mxu0 0.0
    %725 = vmatpush1.msra.mxu0 0.0
    %726 = vmatprep.subr.mxu0 0.0
    %727 = vmatpush1.msra.mxu0 0.0
    %728 = vmatprep.subr.mxu0 0.0
    %729 = vmatpush1.msra.mxu0 0.0
    %730 = vmatprep.subr.mxu0 0.0
    %731 = vmatpush1.msra.mxu0 0.0
    %732 = vmatprep.subr.mxu0 0.0
    %733 = vmatpush1.msra.mxu0 0.0
    %734 = vmatprep.subr.mxu0 0.0
    %735 = vmatpush1.msra.mxu0 0.0
    %736 = vmatprep.subr.mxu0 0.0
    %737 = vmatpush1.msra.mxu0 0.0
    %738 = vmatprep.subr.mxu0 0.0
    %739 = vmatpush1.msra.mxu0 0.0
    %740 = vmatprep.subr.mxu0 0.0
    %741 = vmatpush1.msra.mxu0 0.0
    %742 = vmatprep.subr.mxu0 0.0
    %743 = vmatpush1.msra.mxu0 0.0
    %744 = vmatprep.subr.mxu0 0.0
    %745 = vmatpush1.msra.mxu0 0.0
    %746 = vmatprep.subr.mxu0 0.0
    %747 = vmatpush1.msra.mxu0 0.0
    %748 = vmatprep.subr.mxu0 0.0
    %749 = vmatpush1.msra.mxu0 0.0
    %750 = vmatprep.subr.mxu0 0.0
    %751 = vmatpush1.msra.mxu0 0.0
    %752 = vmatprep.subr.mxu0 0.0
    %753 = vmatpush1.msra.mxu0 0.0
    %754 = vmatprep.subr.mxu0 0.0
    %755 = vmatpush1.msra.mxu0 0.0
    %756 = vmatprep.subr.mxu0 0.0
    %757 = vmatpush1.msra.mxu0 0.0
    %758 = vmatprep.subr.mxu0 0.0
    %759 = vmatpush1.msra.mxu0 0.0
    %760 = vmatprep.subr.mxu0 0.0
    %761 = vmatpush1.msra.mxu0 0.0
    %762 = vmatprep.subr.mxu0 0.0
    %763 = vmatpush1.msra.mxu0 0.0
    %764 = vmatprep.subr.mxu0 0.0
    %765 = vmatpush1.msra.mxu0 0.0
    %766 = vmatprep.subr.mxu0 0.0
    %767 = vmatpush1.msra.mxu0 0.0
    %768 = vmatprep.subr.mxu0 0.0
    %769 = vmatpush1.msra.mxu0 0.0
    %770 = vmatprep.subr.mxu0 0.0
    %771 = vmatpush1.msra.mxu0 0.0
    %772 = vmatprep.subr.mxu0 0.0
    %773 = vmatpush1.msra.mxu0 0.0
    %774 = vmatprep.subr.mxu0 0.0
    %775 = vmatpush1.msra.mxu0 0.0
    %776 = vmatprep.mubr.f32.mxu0 0.0
    %777 = vmatmul.mubr.f32.gmra.mrb[0].mxu0 %v710
    %v778 = vpop.f32.mrb[0].mxu0
    %v779 = vadd.f32 0.0, %v778
    %v780 = vpop.f32.mrb[0].mxu0
    %781 = vdwg.mxu0
    %v782 = vsel %vm134, %v266, 0
    %784 = vmatprep.subr.mxu0 0.0
    %785 = vmatpush1.msra.mxu0 %v45
    %786 = vmatprep.subr.mxu0 0.0
    %787 = vmatpush1.msra.mxu0 0.0
    %788 = vmatprep.subr.mxu0 0.0
    %789 = vmatpush1.msra.mxu0 0.0
    %790 = vmatprep.subr.mxu0 0.0
    %791 = vmatpush1.msra.mxu0 0.0
    %792 = vmatprep.subr.mxu0 0.0
    %793 = vmatpush1.msra.mxu0 0.0
    %794 = vmatprep.subr.mxu0 0.0
    %795 = vmatpush1.msra.mxu0 0.0
    %796 = vmatprep.subr.mxu0 0.0
    %797 = vmatpush1.msra.mxu0 0.0
    %798 = vmatprep.subr.mxu0 0.0
    %799 = vmatpush1.msra.mxu0 0.0
    %800 = vmatprep.subr.mxu0 0.0
    %801 = vmatpush1.msra.mxu0 0.0
    %802 = vmatprep.subr.mxu0 0.0
    %803 = vmatpush1.msra.mxu0 0.0
    %804 = vmatprep.subr.mxu0 0.0
    %805 = vmatpush1.msra.mxu0 0.0
    %806 = vmatprep.subr.mxu0 0.0
    %807 = vmatpush1.msra.mxu0 0.0
    %808 = vmatprep.subr.mxu0 0.0
    %809 = vmatpush1.msra.mxu0 0.0
    %810 = vmatprep.subr.mxu0 0.0
    %811 = vmatpush1.msra.mxu0 0.0
    %812 = vmatprep.subr.mxu0 0.0
    %813 = vmatpush1.msra.mxu0 0.0
    %814 = vmatprep.subr.mxu0 0.0
    %815 = vmatpush1.msra.mxu0 0.0
    %816 = vmatprep.subr.mxu0 0.0
    %817 = vmatpush1.msra.mxu0 0.0
    %818 = vmatprep.subr.mxu0 0.0
    %819 = vmatpush1.msra.mxu0 0.0
    %820 = vmatprep.subr.mxu0 0.0
    %821 = vmatpush1.msra.mxu0 0.0
    %822 = vmatprep.subr.mxu0 0.0
    %823 = vmatpush1.msra.mxu0 0.0
    %824 = vmatprep.subr.mxu0 0.0
    %825 = vmatpush1.msra.mxu0 0.0
    %826 = vmatprep.subr.mxu0 0.0
    %827 = vmatpush1.msra.mxu0 0.0
    %828 = vmatprep.subr.mxu0 0.0
    %829 = vmatpush1.msra.mxu0 0.0
    %830 = vmatprep.subr.mxu0 0.0
    %831 = vmatpush1.msra.mxu0 0.0
    %832 = vmatprep.subr.mxu0 0.0
    %833 = vmatpush1.msra.mxu0 0.0
    %834 = vmatprep.subr.mxu0 0.0
    %835 = vmatpush1.msra.mxu0 0.0
    %836 = vmatprep.subr.mxu0 0.0
    %837 = vmatpush1.msra.mxu0 0.0
    %838 = vmatprep.subr.mxu0 0.0
    %839 = vmatpush1.msra.mxu0 0.0
    %840 = vmatprep.subr.mxu0 0.0
    %841 = vmatpush1.msra.mxu0 0.0
    %842 = vmatprep.subr.mxu0 0.0
    %843 = vmatpush1.msra.mxu0 0.0
    %844 = vmatprep.subr.mxu0 0.0
    %845 = vmatpush1.msra.mxu0 0.0
    %846 = vmatprep.subr.mxu0 0.0
    %847 = vmatpush1.msra.mxu0 0.0
    %848 = vmatprep.mubr.f32.mxu0 0.0
    %849 = vmatmul.mubr.f32.gmra.mrb[0].mxu0 %v782
    %v850 = vpop.f32.mrb[0].mxu0
    %v851 = vadd.f32 0.0, %v850
    %v852 = vpop.f32.mrb[0].mxu0
    %853 = vdwg.mxu0
    %v854 = vrcp.pop %v277
    %v856 = vrot.slane %v854, 1
    %v857 = vrot.slane %v854, 2
    %v858 = vrot.slane %v854, 3
    %v859 = vrot.slane %v854, 4
    %v860 = vrot.slane %v854, 5
    %v861 = vrot.slane %v854, 6
    %v862 = vrot.slane %v854, 7
    %v871 = vmul.f32 %v347, %v854
    %v872 = vmul.f32 %v419, %v856
    %v873 = vmul.f32 %v491, %v857
    %v874 = vmul.f32 %v563, %v858
    %v875 = vmul.f32 %v635, %v859
    %v876 = vmul.f32 %v707, %v860
    %v877 = vmul.f32 %v779, %v861
    %v878 = vmul.f32 %v851, %v862
    %v887 = vrot.slane %v872, 7
    %v888 = vsel %vm119, %v887, %v871
    %v889 = vrot.slane %v873, 6
    %v890 = vsel %vm121, %v889, %v888
    %v891 = vrot.slane %v874, 5
    %v892 = vsel %vm123, %v891, %v890
    %v893 = vrot.slane %v875, 4
    %v894 = vsel %vm125, %v893, %v892
    %v895 = vrot.slane %v876, 3
    %v896 = vsel %vm127, %v895, %v894
    %v897 = vrot.slane %v877, 2
    %v898 = vsel %vm129, %v897, %v896
    %v899 = vrot.slane %v878, 1
    %v900 = vsel %vm131, %v899, %v898
    %902 = vst [vmem:[#allocation7] sm:$0xff] %v900
    // Predicated region
    $region18: #{tpu_custom_call.1} parent=1 // pred_check
      _
    $region19: #{tpu_custom_call.1} parent=1 // pred_check_branch
      %904 = sbr.rel (0) target = $region21
    $region20: #{tpu_custom_call.1} parent=1 // pred_region
      %s906 = ssub.s32 128, 128
      %907 = vsyncadd [#allocation4], %s906
      %s909 = sshll.u32 [#allocation7], 4
      %s910 = int_to_ptr.vmem [resolvable:$true] %s909
      %912 = dma.vmem_to_hbm [thread:$0]  %s910, 128, %s2, [#allocation4]
    $region21: #{tpu_custom_call.1} parent=1 // pred_fallthru
      _
    // Predicated region
    $region22: #{tpu_custom_call.1} parent=1 // pred_check
      _
    $region23: #{tpu_custom_call.1} parent=1 // pred_check_branch
      %914 = sbr.rel (0) target = $region25
    $region24: #{tpu_custom_call.1} parent=1 // pred_region
      %915 = dma.done [#allocation4], 128
    $region25: #{tpu_custom_call.1} parent=1 // pred_fallthru
      _
    %916 = vsyncpa [#allocation3], 1
    %917 = vsyncpa [#allocation6], 1
    %918 = vsyncpa [#allocation4], 1

</llo_original>
